<compile_context>
chip_gen: v7x
topology: tpu7x:2x2x1
jax: 0.10.0
libtpu: 0.0.40
codegen_flags: <defaults>
</compile_context>

<pallas_src>
import functools

import jax
import jax.numpy as jnp
from jax.experimental import pallas as pl
from jax.experimental.pallas import tpu as pltpu


def _round_up(x, m):
    return ((x + m - 1) // m) * m


def _row_tile(n, target, align=8):
    """Sublane-axis tile: multiple of `align` (or the full dim for tiny n),
    capped at `target` and at ~n/2 so the 'parallel' grid axis has >= 2 steps
    (keeps both v7x TensorCores busy).  Partial tail blocks are harmless: the
    garbage rows never land in the valid output region."""
    if n < 2 * align:
        return n                                   # full dim: always legal
    half = _round_up((n + 1) // 2, align)
    return max(align, min(target, half, _round_up(n, align)))


def _col_tile(n, target=4096):
    """Lane-axis streaming tile for phase 1: full dim if it fits, otherwise a
    fixed 128-aligned tile whose tail is masked in-kernel, so the tile choice
    (and VMEM footprint) is independent of C's divisors."""
    return n if n <= target else target


# ---------------------------------------------------------------------------
# Phase 1: per-row statistics in one pass over the input.
# Grid = (row blocks, C blocks); the three (tb,1) outputs double as resident
# accumulators (c_ref holds sum(x-K), sisd_ref holds sum((x-K)^2) until the
# finalize step rewrites them as c = scale*loc + mu*scale/sd and sisd=scale/sd).
# ---------------------------------------------------------------------------
def _row_stats_kernel(params_ref, t_ref, x_ref, ts_ref, c_ref, sisd_ref,
                      shift_ref, *, C, mask_cols):
    k = pl.program_id(1)

    x = x_ref[...].astype(jnp.float32)            # [tb, tc] (upcast in VMEM)
    t = t_ref[...]                                # [tb, 1]  int32
    tc = x.shape[1]

    @pl.when(k == 0)
    def _init():
        ts_ref[...] = jnp.zeros_like(ts_ref)
        c_ref[...] = jnp.zeros_like(c_ref)
        sisd_ref[...] = jnp.zeros_like(sisd_ref)
        shift_ref[...] = x[:, 0:1]                # per-row shift for numerics

    # (1, tc) lane iota -> tiny VALU cost; broadcast only inside the compares.
    col = k * tc + jax.lax.broadcasted_iota(jnp.int32, (1, tc), 1)

    # Target gather (== inputs.gather(1, targets[:,None])).  Valid targets are
    # < C, so garbage tail columns (col >= C) can never match.
    ts_ref[...] += jnp.sum(jnp.where(col == t, x, 0.0), axis=1, keepdims=True)

    # Shifted single-pass sum / sum-of-squares (robust to |mean| >> spread).
    d = x - shift_ref[...]
    if mask_cols:
        d = jnp.where(col < C, d, 0.0)            # tail columns contribute 0
    c_ref[...] += jnp.sum(d, axis=1, keepdims=True)
    sisd_ref[...] += jnp.sum(d * d, axis=1, keepdims=True)

    @pl.when(k == pl.num_programs(1) - 1)
    def _finalize():
        scale = params_ref[0]
        scale_loc = params_ref[1]                 # scale * loc (precomputed)
        s1 = c_ref[...]
        s2 = sisd_ref[...]
        mean_d = s1 * (1.0 / C)
        mu = shift_ref[...] + mean_d
        var = (s2 - mean_d * s1) * (1.0 / (C - 1))      # unbiased (ddof=1)
        # Guard tiny negative roundoff; zero-variance rows give inf (torch
        # also diverges there).
        var = jnp.maximum(var, 0.0)
        sisd = scale * jax.lax.rsqrt(var)         # scale / sd
        sisd_ref[...] = sisd
        c_ref[...] = scale_loc + mu * sisd        # scale*loc + mu*scale/sd


# ---------------------------------------------------------------------------
# Phase 2: tiled [B,B] softplus, reduced to per-row partial sums.
# Inner loop per element: one mul, one sub, softplus (scale/loc pre-folded).
# ---------------------------------------------------------------------------
def _zloss_rowsum_kernel(ts_ref, c_ref, sisd_ref, rowsum_ref, acc_ref,
                         *, B, mask_cols):
    j = pl.program_id(1)

    @pl.when(j == 0)
    def _init():
        acc_ref[...] = jnp.zeros_like(acc_ref)

    ts = ts_ref[...]                              # [tbi, 1]
    c = c_ref[...]                                # [1, tbj]
    sisd = sisd_ref[...]                          # [1, tbj]
    tbj = c.shape[1]

    # scale*(loc - z[i,j]) == c[j] - ts[i]*sisd[j]
    zl = jax.nn.softplus(c - ts * sisd)           # [tbi, tbj]
    if mask_cols:
        col = j * tbj + jax.lax.broadcasted_iota(jnp.int32, (1, tbj), 1)
        zl = jnp.where(col < B, zl, 0.0)          # padded columns contribute 0

    # Lane-dense accumulation: VALU adds of 128-wide lane groups into the
    # (tbi, 128) scratch; cross-lane XLU reduce only at the last column step.
    acc = acc_ref[...]
    for g in range(tbj // 128):                   # static, lane-aligned slabs
        acc = acc + zl[:, g * 128:(g + 1) * 128]
    acc_ref[...] = acc

    @pl.when(j == pl.num_programs(1) - 1)
    def _finalize():
        rowsum_ref[...] = jnp.sum(acc_ref[...], axis=1, keepdims=True)


def zloss_forward(inputs, targets, loc=0.0, scale=1.0):
    """inputs: [B, C] float (f32 or bf16), targets: [B] int. Returns scalar f32."""
    B, C = inputs.shape
    targets_col = targets.reshape(B, 1).astype(jnp.int32)
    params = jnp.array([scale, scale * loc], dtype=jnp.float32)

    # ---------------- Phase 1: per-row ts / c / sisd -------------------------
    tb = _row_tile(B, 256)
    tc = _col_tile(C, 4096)            # <= ~4 MiB f32 per input buffer
    grid1 = (pl.cdiv(B, tb), pl.cdiv(C, tc))
    mask_cols1 = (C % tc) != 0

    ts, c, sisd = pl.pallas_call(
        functools.partial(_row_stats_kernel, C=C, mask_cols=mask_cols1),
        grid=grid1,
        in_specs=[
            pl.BlockSpec(memory_space=pltpu.MemorySpace.SMEM),   # [scale, scale*loc]
            pl.BlockSpec((tb, 1), lambda i, k: (i, 0)),          # targets
            pl.BlockSpec((tb, tc), lambda i, k: (i, k)),         # inputs tile
        ],
        out_specs=[
            pl.BlockSpec((tb, 1), lambda i, k: (i, 0)),          # ts
            pl.BlockSpec((tb, 1), lambda i, k: (i, 0)),          # c
            pl.BlockSpec((tb, 1), lambda i, k: (i, 0)),          # sisd
        ],
        out_shape=[
            jax.ShapeDtypeStruct((B, 1), jnp.float32),
            jax.ShapeDtypeStruct((B, 1), jnp.float32),
            jax.ShapeDtypeStruct((B, 1), jnp.float32),
        ],
        scratch_shapes=[pltpu.VMEM((tb, 1), jnp.float32)],       # per-row shift
        compiler_params=pltpu.CompilerParams(
            dimension_semantics=("parallel", "arbitrary"),
            vmem_limit_bytes=32 * 1024 * 1024),
        cost_estimate=pl.CostEstimate(
            flops=6 * B * C, transcendentals=B,
            bytes_accessed=inputs.dtype.itemsize * B * C + 24 * B),
    )(params, targets_col, inputs)

    # ---------------- Phase 2: [B, B] softplus -> per-row sums ---------------
    tbi = _row_tile(B, 256)
    tbj = min(_round_up(B, 128), 2048)
    Bp = _round_up(B, tbj)             # pad the tiny column vectors so the
    pad = Bp - B                       # lane axis tiles exactly (no OOB reads)
    c_row = jnp.pad(c.reshape(1, B), ((0, 0), (0, pad)))
    sisd_row = jnp.pad(sisd.reshape(1, B), ((0, 0), (0, pad)))
    grid2 = (pl.cdiv(B, tbi), Bp // tbj)
    mask_cols2 = pad != 0

    row_sums = pl.pallas_call(
        functools.partial(_zloss_rowsum_kernel, B=B, mask_cols=mask_cols2),
        grid=grid2,
        in_specs=[
            pl.BlockSpec((tbi, 1), lambda i, j: (i, 0)),         # ts
            pl.BlockSpec((1, tbj), lambda i, j: (0, j)),         # c
            pl.BlockSpec((1, tbj), lambda i, j: (0, j)),         # sisd
        ],
        out_specs=pl.BlockSpec((tbi, 1), lambda i, j: (i, 0)),
        out_shape=jax.ShapeDtypeStruct((B, 1), jnp.float32),
        scratch_shapes=[pltpu.VMEM((tbi, 128), jnp.float32)],    # lane-dense acc
        compiler_params=pltpu.CompilerParams(
            dimension_semantics=("parallel", "arbitrary"),
            vmem_limit_bytes=32 * 1024 * 1024),
        cost_estimate=pl.CostEstimate(
            flops=3 * B * B, transcendentals=2 * B * B,
            bytes_accessed=24 * B),
    )(ts, c_row, sisd_row)

    # reduce=True, size_average=True -> mean over all B*B elements; the
    # 1/scale factor is folded out of the inner loop into this scalar.
    return jnp.sum(row_sums) * (1.0 / scale) / (B * B)


def _zloss_reference(inputs, targets, loc=0.0, scale=1.0):
    inputs = inputs.astype(jnp.float32)
    mu = jnp.mean(inputs, axis=1)                                 # [B]
    sd = jnp.std(inputs, axis=1, ddof=1)                          # [B]
    ts = jnp.take_along_axis(inputs, targets[:, None], axis=1)    # [B, 1]
    z = (ts - mu) / sd                                            # [B, B]
    zl = (1.0 / scale) * jax.nn.softplus(scale * (loc - z))
    return jnp.mean(zl)


if __name__ == "__main__":
    key = jax.random.PRNGKey(0)
    k1, k2 = jax.random.split(key)

    B, C = 8, 32
    inputs = jax.random.normal(k1, (B, C), dtype=jnp.float32)
    targets = jax.random.randint(k2, (B,), 0, C, dtype=jnp.int32)

    # Module __init__ defaults: loc=0.0, scale=1.0.
    # TODO(synk): torch's _check_valid_args asserts (dtype/dim checks) are not
    # reproduced in-kernel.
    loc, scale = 0.0, 1.0

    out = zloss_forward(inputs, targets, loc, scale)
    out = jax.block_until_ready(out)

    ref = _zloss_reference(inputs, targets, loc, scale)
    assert jnp.allclose(out, ref, rtol=1e-5, atol=1e-5), (out, ref)

    print("KERNEL_OK")
</pallas_src>

<mosaic_0001>
module attributes {stable_mosaic.version = 11 : i64} {
  func.func @_row_stats_kernel(%arg0: i32, %arg1: i32, %arg2: memref<2xf32, #tpu.memory_space<smem>>, %arg3: memref<8x1xi32, #tpu.memory_space<vmem>>, %arg4: memref<8x32xf32, #tpu.memory_space<vmem>>, %arg5: memref<8x1xf32, #tpu.memory_space<vmem>>, %arg6: memref<8x1xf32, #tpu.memory_space<vmem>>, %arg7: memref<8x1xf32, #tpu.memory_space<vmem>>, %arg8: memref<8x1xf32, #tpu.memory_space<vmem>>) attributes {dimension_semantics = [#tpu.dimension_semantics<parallel>, #tpu.dimension_semantics<arbitrary>], iteration_bounds = array<i64: 1, 1>, scalar_prefetch = 0 : i64, scratch_operands = 1 : i64, tpu.core_type = #tpu.core_type<tc>, window_params = [{transform_indices = @transform_0, window_bounds = array<i64: 2>}, {transform_indices = @transform_1, window_bounds = array<i64: 8, 1>}, {transform_indices = @transform_2, window_bounds = array<i64: 8, 32>}, {transform_indices = @transform_3, window_bounds = array<i64: 8, 1>}, {transform_indices = @transform_4, window_bounds = array<i64: 8, 1>}, {transform_indices = @transform_5, window_bounds = array<i64: 8, 1>}]} {
    %c0 = arith.constant 0 : index
    %c0_0 = arith.constant 0 : index
    %0 = vector.load %arg4[%c0, %c0_0] : memref<8x32xf32, #tpu.memory_space<vmem>>, vector<8x32xf32>
    %c0_1 = arith.constant 0 : index
    %c0_2 = arith.constant 0 : index
    %1 = vector.load %arg3[%c0_1, %c0_2] : memref<8x1xi32, #tpu.memory_space<vmem>>, vector<8x1xi32>
    %c0_i32 = arith.constant 0 : i32
    %2 = arith.cmpi eq, %arg1, %c0_i32 : i32
    %3 = arith.extui %2 : i1 to i32
    %c0_i32_3 = arith.constant 0 : i32
    %4 = arith.cmpi ne, %3, %c0_i32_3 : i32
    scf.if %4 {
      %cst_23 = arith.constant 0.000000e+00 : f32
      %36 = vector.broadcast %cst_23 : f32 to vector<8x1xf32>
      %c0_24 = arith.constant 0 : index
      %c0_25 = arith.constant 0 : index
      %37 = vector.load %arg5[%c0_24, %c0_25] : memref<8x1xf32, #tpu.memory_space<vmem>>, vector<8x1xf32>
      tpu.vector_store %arg5[%c0_24, %c0_25], %36 {strides = array<i32>} : memref<8x1xf32, #tpu.memory_space<vmem>>, vector<8x1xf32>,
      %cst_26 = arith.constant 0.000000e+00 : f32
      %38 = vector.broadcast %cst_26 : f32 to vector<8x1xf32>
      %c0_27 = arith.constant 0 : index
      %c0_28 = arith.constant 0 : index
      %39 = vector.load %arg6[%c0_27, %c0_28] : memref<8x1xf32, #tpu.memory_space<vmem>>, vector<8x1xf32>
      tpu.vector_store %arg6[%c0_27, %c0_28], %38 {strides = array<i32>} : memref<8x1xf32, #tpu.memory_space<vmem>>, vector<8x1xf32>,
      %cst_29 = arith.constant 0.000000e+00 : f32
      %40 = vector.broadcast %cst_29 : f32 to vector<8x1xf32>
      %c0_30 = arith.constant 0 : index
      %c0_31 = arith.constant 0 : index
      %41 = vector.load %arg7[%c0_30, %c0_31] : memref<8x1xf32, #tpu.memory_space<vmem>>, vector<8x1xf32>
      tpu.vector_store %arg7[%c0_30, %c0_31], %40 {strides = array<i32>} : memref<8x1xf32, #tpu.memory_space<vmem>>, vector<8x1xf32>,
      %42 = vector.extract_strided_slice %0 {offsets = [0, 0], sizes = [8, 1], strides = [1, 1]} : vector<8x32xf32> to vector<8x1xf32>
      %c0_32 = arith.constant 0 : index
      %c0_33 = arith.constant 0 : index
      %43 = vector.load %arg8[%c0_32, %c0_33] : memref<8x1xf32, #tpu.memory_space<vmem>>, vector<8x1xf32>
      tpu.vector_store %arg8[%c0_32, %c0_33], %42 {strides = array<i32>} : memref<8x1xf32, #tpu.memory_space<vmem>>, vector<8x1xf32>,
    } else {
    }
    %c32_i32 = arith.constant 32 : i32
    %5 = arith.muli %arg1, %c32_i32 : i32
    %6 = tpu.iota {dimensions = array<i32: 1>} : vector<1x32xi32>
    %7 = vector.broadcast %5 : i32 to vector<1x32xi32>
    %8 = arith.addi %7, %6 : vector<1x32xi32>
    %c0_4 = arith.constant 0 : index
    %c0_5 = arith.constant 0 : index
    %9 = vector.load %arg5[%c0_4, %c0_5] : memref<8x1xf32, #tpu.memory_space<vmem>>, vector<8x1xf32>
    %10 = vector.broadcast %8 : vector<1x32xi32> to vector<8x32xi32>
    %11 = vector.broadcast %1 : vector<8x1xi32> to vector<8x32xi32>
    %12 = arith.cmpi eq, %10, %11 : vector<8x32xi32>
    %cst = arith.constant 0.000000e+00 : f32
    %13 = vector.broadcast %cst : f32 to vector<8x32xf32>
    %14 = arith.select %12, %0, %13 : vector<8x32xi1>, vector<8x32xf32>
    %cst_6 = arith.constant dense<0.000000e+00> : vector<8xf32>
    %15 = vector.multi_reduction <add>, %14, %cst_6 [1] : vector<8x32xf32> to vector<8xf32>
    %16 = vector.shape_cast %15 : vector<8xf32> to vector<8x1xf32>
    %17 = arith.addf %9, %16 : vector<8x1xf32>
    %c0_7 = arith.constant 0 : index
    %c0_8 = arith.constant 0 : index
    %18 = vector.load %arg5[%c0_7, %c0_8] : memref<8x1xf32, #tpu.memory_space<vmem>>, vector<8x1xf32>
    tpu.vector_store %arg5[%c0_7, %c0_8], %17 {strides = array<i32>} : memref<8x1xf32, #tpu.memory_space<vmem>>, vector<8x1xf32>,
    %c0_9 = arith.constant 0 : index
    %c0_10 = arith.constant 0 : index
    %19 = vector.load %arg8[%c0_9, %c0_10] : memref<8x1xf32, #tpu.memory_space<vmem>>, vector<8x1xf32>
    %20 = vector.broadcast %19 : vector<8x1xf32> to vector<8x32xf32>
    %21 = arith.subf %0, %20 : vector<8x32xf32>
    %c0_11 = arith.constant 0 : index
    %c0_12 = arith.constant 0 : index
    %22 = vector.load %arg6[%c0_11, %c0_12] : memref<8x1xf32, #tpu.memory_space<vmem>>, vector<8x1xf32>
    %cst_13 = arith.constant dense<0.000000e+00> : vector<8xf32>
    %23 = vector.multi_reduction <add>, %21, %cst_13 [1] : vector<8x32xf32> to vector<8xf32>
    %24 = vector.shape_cast %23 : vector<8xf32> to vector<8x1xf32>
    %25 = arith.addf %22, %24 : vector<8x1xf32>
    %c0_14 = arith.constant 0 : index
    %c0_15 = arith.constant 0 : index
    %26 = vector.load %arg6[%c0_14, %c0_15] : memref<8x1xf32, #tpu.memory_space<vmem>>, vector<8x1xf32>
    tpu.vector_store %arg6[%c0_14, %c0_15], %25 {strides = array<i32>} : memref<8x1xf32, #tpu.memory_space<vmem>>, vector<8x1xf32>,
    %c0_16 = arith.constant 0 : index
    %c0_17 = arith.constant 0 : index
    %27 = vector.load %arg7[%c0_16, %c0_17] : memref<8x1xf32, #tpu.memory_space<vmem>>, vector<8x1xf32>
    %28 = arith.mulf %21, %21 : vector<8x32xf32>
    %cst_18 = arith.constant dense<0.000000e+00> : vector<8xf32>
    %29 = vector.multi_reduction <add>, %28, %cst_18 [1] : vector<8x32xf32> to vector<8xf32>
    %30 = vector.shape_cast %29 : vector<8xf32> to vector<8x1xf32>
    %31 = arith.addf %27, %30 : vector<8x1xf32>
    %c0_19 = arith.constant 0 : index
    %c0_20 = arith.constant 0 : index
    %32 = vector.load %arg7[%c0_19, %c0_20] : memref<8x1xf32, #tpu.memory_space<vmem>>, vector<8x1xf32>
    tpu.vector_store %arg7[%c0_19, %c0_20], %31 {strides = array<i32>} : memref<8x1xf32, #tpu.memory_space<vmem>>, vector<8x1xf32>,
    %c0_i32_21 = arith.constant 0 : i32
    %33 = arith.cmpi eq, %arg1, %c0_i32_21 : i32
    %34 = arith.extui %33 : i1 to i32
    %c0_i32_22 = arith.constant 0 : i32
    %35 = arith.cmpi ne, %34, %c0_i32_22 : i32
    scf.if %35 {
      %c0_23 = arith.constant 0 : index
      %36 = memref.load %arg2[%c0_23] : memref<2xf32, #tpu.memory_space<smem>>
      %c1 = arith.constant 1 : index
      %37 = memref.load %arg2[%c1] : memref<2xf32, #tpu.memory_space<smem>>
      %c0_24 = arith.constant 0 : index
      %c0_25 = arith.constant 0 : index
      %38 = vector.load %arg6[%c0_24, %c0_25] : memref<8x1xf32, #tpu.memory_space<vmem>>, vector<8x1xf32>
      %c0_26 = arith.constant 0 : index
      %c0_27 = arith.constant 0 : index
      %39 = vector.load %arg7[%c0_26, %c0_27] : memref<8x1xf32, #tpu.memory_space<vmem>>, vector<8x1xf32>
      %cst_28 = arith.constant 3.125000e-02 : f32
      %40 = vector.broadcast %cst_28 : f32 to vector<8x1xf32>
      %41 = arith.mulf %38, %40 : vector<8x1xf32>
      %c0_29 = arith.constant 0 : index
      %c0_30 = arith.constant 0 : index
      %42 = vector.load %arg8[%c0_29, %c0_30] : memref<8x1xf32, #tpu.memory_space<vmem>>, vector<8x1xf32>
      %43 = arith.addf %42, %41 : vector<8x1xf32>
      %44 = arith.mulf %41, %38 : vector<8x1xf32>
      %45 = arith.subf %39, %44 : vector<8x1xf32>
      %cst_31 = arith.constant 0.0322580636 : f32
      %46 = vector.broadcast %cst_31 : f32 to vector<8x1xf32>
      %47 = arith.mulf %45, %46 : vector<8x1xf32>
      %cst_32 = arith.constant 0.000000e+00 : f32
      %48 = vector.broadcast %cst_32 : f32 to vector<8x1xf32>
      %49 = arith.maximumf %47, %48 : vector<8x1xf32>
      %50 = math.rsqrt %49 : vector<8x1xf32>
      %51 = vector.broadcast %36 : f32 to vector<8x1xf32>
      %52 = arith.mulf %51, %50 : vector<8x1xf32>
      %c0_33 = arith.constant 0 : index
      %c0_34 = arith.constant 0 : index
      %53 = vector.load %arg7[%c0_33, %c0_34] : memref<8x1xf32, #tpu.memory_space<vmem>>, vector<8x1xf32>
      tpu.vector_store %arg7[%c0_33, %c0_34], %52 {strides = array<i32>} : memref<8x1xf32, #tpu.memory_space<vmem>>, vector<8x1xf32>,
      %54 = arith.mulf %43, %52 : vector<8x1xf32>
      %55 = vector.broadcast %37 : f32 to vector<8x1xf32>
      %56 = arith.addf %55, %54 : vector<8x1xf32>
      %c0_35 = arith.constant 0 : index
      %c0_36 = arith.constant 0 : index
      %57 = vector.load %arg6[%c0_35, %c0_36] : memref<8x1xf32, #tpu.memory_space<vmem>>, vector<8x1xf32>
      tpu.vector_store %arg6[%c0_35, %c0_36], %56 {strides = array<i32>} : memref<8x1xf32, #tpu.memory_space<vmem>>, vector<8x1xf32>,
    } else {
    }
    return
  }
  func.func @transform_0(%arg0: i32, %arg1: i32) -> i32 {
    %c0_i32 = arith.constant 0 : i32
    %c0_i32_0 = arith.constant 0 : i32
    return %c0_i32 : i32
  }
  func.func @transform_1(%arg0: i32, %arg1: i32) -> (i32, i32) {
    %c0_i32 = arith.constant 0 : i32
    %c0_i32_0 = arith.constant 0 : i32
    return %arg0, %c0_i32 : i32, i32
  }
  func.func @transform_2(%arg0: i32, %arg1: i32) -> (i32, i32) {
    %c0_i32 = arith.constant 0 : i32
    return %arg0, %arg1 : i32, i32
  }
  func.func @transform_3(%arg0: i32, %arg1: i32) -> (i32, i32) {
    %c0_i32 = arith.constant 0 : i32
    %c0_i32_0 = arith.constant 0 : i32
    return %arg0, %c0_i32 : i32, i32
  }
  func.func @transform_4(%arg0: i32, %arg1: i32) -> (i32, i32) {
    %c0_i32 = arith.constant 0 : i32
    %c0_i32_0 = arith.constant 0 : i32
    return %arg0, %c0_i32 : i32, i32
  }
  func.func @transform_5(%arg0: i32, %arg1: i32) -> (i32, i32) {
    %c0_i32 = arith.constant 0 : i32
    %c0_i32_0 = arith.constant 0 : i32
    return %arg0, %c0_i32 : i32, i32
  }
}

</mosaic_0001>

<llo_original>
// kernel: tpu_custom_call.1
$region0: #{tpu_custom_call.1}
  #allocation0 [shape = 'u32[]', space=smem, size = 0x4, offset = 0x4, fixed_abs, tag = 'smem constant byte address 0x4 - core index']
  #allocation1 [shape = 'u32[144,128]{1,0:T(1,128)}', space=vmem, size = 0x12000, scoped, tag = 'internal scratch']
  #allocation2 [shape = 'f32[8,1]{1,0:T(8,128)}', space=vmem, size = 0x1000, scoped, tag = 'scratch operand']
  %s0 = inlined_call_operand.vmem [shape: f32[2], index: 0, kind: input, shape index: {}]
  %s1 = inlined_call_operand.vmem [shape: s32[8,1], index: 1, kind: input, shape index: {}]
  %s2 = inlined_call_operand.vmem [shape: f32[8,32], index: 2, kind: input, shape index: {}]
  %s3 = inlined_call_operand.vmem [shape: f32[8,1], index: 3, kind: output, shape index: {0}]
  %s4 = inlined_call_operand.vmem [shape: f32[8,1], index: 4, kind: output, shape index: {1}]
  %s5 = inlined_call_operand.vmem [shape: f32[8,1], index: 5, kind: output, shape index: {2}]
  %6 = xla_tuple %s3, %s4, %s5
  %s7 = sld [smem:[#allocation0]]
  $region50: #{tpu_custom_call.1} parent=0
    _
  %s9 = ssub.s32 1, %s7
  %s10 = scalar_select 0, %s9, %s7
  $region1: #{tpu_custom_call.1} parent=0
    #allocation3 [shape = 'u8[512]{0}', space=smem, size = 0x200, scoped, tag = 'input window, operand 0, single buffered']
    #allocation4 [shape = 's32[1]{0}', space=sflag, size = 0x4, scoped, tag = 'scoped memory for tpu_custom_call.1']
    %11 = vsyncpa [#allocation4], 0
    // Predicated region
    $region2: #{tpu_custom_call.1} parent=1 // pred_check
      _
    $region3: #{tpu_custom_call.1} parent=1 // pred_check_branch
      %13 = sbr.rel (0) target = $region5
    $region4: #{tpu_custom_call.1} parent=1 // pred_region
      %s15 = ssub.s32 16, 16
      %16 = vsyncadd [#allocation4], %s15
      %s18 = sshll.u32 %s0, 4
      %s19 = int_to_ptr.vmem [resolvable:$true] %s18
      %21 = dma.vmem_to_smem %s19, 16, [#allocation3], [#allocation4]
    $region5: #{tpu_custom_call.1} parent=1 // pred_fallthru
      _
    // Predicated region
    $region6: #{tpu_custom_call.1} parent=1 // pred_check
      _
    $region7: #{tpu_custom_call.1} parent=1 // pred_check_branch
      %23 = sbr.rel (0) target = $region9
    $region8: #{tpu_custom_call.1} parent=1 // pred_region
      _
    $region9: #{tpu_custom_call.1} parent=1 // pred_fallthru
      _
    // Predicated region
    $region10: #{tpu_custom_call.1} parent=1 // pred_check
      _
    $region11: #{tpu_custom_call.1} parent=1 // pred_check_branch
      %25 = sbr.rel (0) target = $region13
    $region12: #{tpu_custom_call.1} parent=1 // pred_region
      _
    $region13: #{tpu_custom_call.1} parent=1 // pred_fallthru
      _
    // Predicated region
    $region14: #{tpu_custom_call.1} parent=1 // pred_check
      _
    $region15: #{tpu_custom_call.1} parent=1 // pred_check_branch
      %27 = sbr.rel (0) target = $region17
    $region16: #{tpu_custom_call.1} parent=1 // pred_region
      %28 = dma.done [#allocation4], 16
    $region17: #{tpu_custom_call.1} parent=1 // pred_fallthru
      _
    %29 = sfence
    %v30 = vld [vmem:[%s2] sm:$0xff]
    %v31 = vld [vmem:[%s1] sm:$0xff]
    %p32 = scmp.eq.s32.totalorder 0, 0
    // Predicated region
    $region18: #{tpu_custom_call.1} parent=1 // pred_check
      %p33 = pneg %p32
    $region19: #{tpu_custom_call.1} parent=1 // pred_check_branch
      %35 = sbr.rel (%p33) target = $region21
    $region20: #{tpu_custom_call.1} parent=1 // pred_region
      %vm36 = vcmask 7168
      %37 = vst.msk [vmem:[%s3] sm:$0xff] %vm36, 0.0
      %38 = vst.msk [vmem:[%s4] sm:$0xff] %vm36, 0.0
      %39 = vst.msk [vmem:[%s5] sm:$0xff] %vm36, 0.0
      %40 = vst.msk [vmem:[#allocation2] sm:$0xff] %vm36, %v30
    $region21: #{tpu_custom_call.1} parent=1 // pred_fallthru
      _
    %s41 = smul.u32 0, 32
    %v42 = vlaneseq
    %v43 = vand.u32 %v42, 127
    %v44 = vstv %s41
    %v45 = vadd.s32 %v44, %v43
    %v46 = vld [vmem:[%s3] sm:$0xff]
    %47 = vset.pattern.permute.xlu0 0
    %48 = vperm.xlu0 %47, %v31
    %v49 = vpop.permute.xlu0 %48
    %vm50 = vcmp.eq.s32.totalorder %v45, %v49
    %v51 = vsel %vm50, %v30, 0.0
    %vm52 = vcmask 261120
    %v53 = vsel %vm52, %v51, 0.0
    %54 = vadd.xlane.f32.xlu0 %v53
    %v55 = vpop.xlane.xlu0 %54
    %v56 = vadd.f32 %v46, %v55
    %vm57 = vcmask 7168
    %58 = vst.msk [vmem:[%s3] sm:$0xff] %vm57, %v56
    %v59 = vld [vmem:[#allocation2] sm:$0xff]
    %61 = vset.pattern.permute.xlu0 0
    %62 = vperm.xlu0 %61, %v59
    %v63 = vpop.permute.xlu0 %62
    %v65 = vsub.f32 %v30, %v63
    %v66 = vld [vmem:[%s4] sm:$0xff]
    %v67 = vsel %vm52, %v65, 0.0
    %68 = vadd.xlane.f32.xlu0 %v67
    %v69 = vpop.xlane.xlu0 %68
    %v70 = vadd.f32 %v66, %v69
    %71 = vst.msk [vmem:[%s4] sm:$0xff] %vm57, %v70
    %v72 = vld [vmem:[%s5] sm:$0xff]
    %v73 = vmul.f32 %v65, %v65
    %v74 = vsel %vm52, %v73, 0.0
    %75 = vadd.xlane.f32.xlu0 %v74
    %v76 = vpop.xlane.xlu0 %75
    %v77 = vadd.f32 %v72, %v76
    %78 = vst.msk [vmem:[%s5] sm:$0xff] %vm57, %v77
    // Predicated region
    $region22: #{tpu_custom_call.1} parent=1 // pred_check
      %p79 = pneg %p32
    $region23: #{tpu_custom_call.1} parent=1 // pred_check_branch
      %81 = sbr.rel (%p79) target = $region25
    $region24: #{tpu_custom_call.1} parent=1 // pred_region
      %s82 = sld [smem:[#allocation3]]
      %s83 = sld [smem:[#allocation3 + $0x1]]
      %v84 = vld [vmem:[%s4] sm:$0xff]
      %v85 = vld [vmem:[%s5] sm:$0xff]
      %v86 = vmul.f32 %v84, 0.03125
      %v87 = vld [vmem:[#allocation2] sm:$0xff]
      %v88 = vadd.f32 %v87, %v86
      %v89 = vmul.f32 %v86, %v84
      %v90 = vsub.f32 %v85, %v89
      %v91 = vmul.f32 %v90, 0.032258064
      %v92 = vmax.f32 %v91, 0.0
      %v93 = vrsqrt.pop %v92
      %v94 = vstv %s82
      %v95 = vmul.f32 %v94, %v93
      %96 = vst.msk [vmem:[%s5] sm:$0xff] %vm57, %v95
      %v97 = vmul.f32 %v88, %v95
      %v98 = vstv %s83
      %v99 = vadd.f32 %v98, %v97
      %100 = vst.msk [vmem:[%s4] sm:$0xff] %vm57, %v99
    $region25: #{tpu_custom_call.1} parent=1 // pred_fallthru
      _
    // Predicated region
    $region26: #{tpu_custom_call.1} parent=1 // pred_check
      _
    $region27: #{tpu_custom_call.1} parent=1 // pred_check_branch
      %102 = sbr.rel (0) target = $region29
    $region28: #{tpu_custom_call.1} parent=1 // pred_region
      _
    $region29: #{tpu_custom_call.1} parent=1 // pred_fallthru
      _
    // Predicated region
    $region30: #{tpu_custom_call.1} parent=1 // pred_check
      _
    $region31: #{tpu_custom_call.1} parent=1 // pred_check_branch
      %104 = sbr.rel (0) target = $region33
    $region32: #{tpu_custom_call.1} parent=1 // pred_region
      _
    $region33: #{tpu_custom_call.1} parent=1 // pred_fallthru
      _
    // Predicated region
    $region34: #{tpu_custom_call.1} parent=1 // pred_check
      _
    $region35: #{tpu_custom_call.1} parent=1 // pred_check_branch
      %106 = sbr.rel (0) target = $region37
    $region36: #{tpu_custom_call.1} parent=1 // pred_region
      _
    $region37: #{tpu_custom_call.1} parent=1 // pred_fallthru
      _
    // Predicated region
    $region38: #{tpu_custom_call.1} parent=1 // pred_check
      _
    $region39: #{tpu_custom_call.1} parent=1 // pred_check_branch
      %108 = sbr.rel (0) target = $region41
    $region40: #{tpu_custom_call.1} parent=1 // pred_region
      _
    $region41: #{tpu_custom_call.1} parent=1 // pred_fallthru
      _
    // Predicated region
    $region42: #{tpu_custom_call.1} parent=1 // pred_check
      _
    $region43: #{tpu_custom_call.1} parent=1 // pred_check_branch
      %110 = sbr.rel (0) target = $region45
    $region44: #{tpu_custom_call.1} parent=1 // pred_region
      _
    $region45: #{tpu_custom_call.1} parent=1 // pred_fallthru
      _
    // Predicated region
    $region46: #{tpu_custom_call.1} parent=1 // pred_check
      _
    $region47: #{tpu_custom_call.1} parent=1 // pred_check_branch
      %112 = sbr.rel (0) target = $region49
    $region48: #{tpu_custom_call.1} parent=1 // pred_region
      _
    $region49: #{tpu_custom_call.1} parent=1 // pred_fallthru
      _
    %113 = vsyncpa [#allocation4], 1

</llo_original>
